<compile_context>
chip_gen: v6e
topology: v6e:2x2x1
jax: 0.10.0
libtpu: 0.0.40
codegen_flags: <defaults>
</compile_context>

<pallas_src>
import functools

import jax
import jax.numpy as jnp
import numpy as np
from jax.experimental import pallas as pl
from jax.experimental.pallas import tpu as pltpu


def _round_up(x, m):
    return ((x + m - 1) // m) * m


def decoupler_head_kernel(x_ref, w_ref, bdc_ref, o_ref, y_scr,
                          *, dim_f, num_f_center, eps, mxu_dtype):
    f32 = jnp.float32

    # ---- 1) fused projection over all feature centers: one MXU matmul ----
    x = x_ref[...]                                            # (tb, dim_f)
    w = w_ref[...]                                            # (dim_f, K*dim_f)
    if mxu_dtype is not None:
        x = x.astype(mxu_dtype)
        w = w.astype(mxu_dtype)
    y_scr[...] = jnp.dot(x, w, preferred_element_type=f32)    # (tb, K*dim_f), f32 accum

    # ---- 2) per-center L2 normalization (rsqrt + mul on VPU/EUP) ----
    # Slices are taken on the VMEM scratch ref, not on register values.
    for k in range(num_f_center):
        sl = slice(k * dim_f, (k + 1) * dim_f)
        yk = y_scr[:, sl]                                     # (tb, dim_f)
        ssq = jnp.sum(yk * yk, axis=-1, keepdims=True)        # (tb, 1)
        # F.normalize: x / max(||x||, eps) == x * rsqrt(max(||x||^2, eps^2))
        y_scr[:, sl] = yk * jax.lax.rsqrt(jnp.maximum(ssq, eps * eps))

    # ---- 3) classifier column normalization (over dim_f) ----
    # bdc = block_diag(classifier, ..., classifier); zero rows do not change the
    # column norms, so normalizing its columns == normalizing the classifier.
    bdc = bdc_ref[...].astype(f32)                            # (K*dim_f, K*C)
    csq = jnp.sum(bdc * bdc, axis=0, keepdims=True)           # (1, K*C)
    bdc_n = bdc * jax.lax.rsqrt(jnp.maximum(csq, eps * eps))

    # ---- 4) one fused classification matmul + single lane-dense store ----
    y_n = y_scr[...]
    if mxu_dtype is not None:
        y_n = y_n.astype(mxu_dtype)
        bdc_n = bdc_n.astype(mxu_dtype)
    out = jnp.dot(y_n, bdc_n, preferred_element_type=f32)     # (tb, K*C)
    o_ref[...] = out.astype(o_ref.dtype)


def decoupler_head(x, decoup_metrixs, classifier, *, block_b=512, mxu_dtype=None):
    B, dim_f = x.shape
    kd = decoup_metrixs.shape[1]
    assert kd % dim_f == 0, "decoup_metrixs must be (dim_f, dim_f * num_f_center)"
    num_f_center = kd // dim_f
    num_classes = classifier.shape[1]
    kc = num_f_center * num_classes

    # Batch tile: multiple of 8 sublanes; pad B to a whole number of tiles.
    # Padded rows are all-zero -> normalized to zero -> zero output; sliced off below.
    tb = min(_round_up(block_b, 8), _round_up(B, 8))
    b_pad = _round_up(B, tb)
    x_p = jnp.pad(x, ((0, b_pad - B), (0, 0))) if b_pad != B else x

    # Block-diagonal classifier (pure layout plumbing; normalization stays in-kernel).
    # Turns K tiny (tb, dim_f)@(dim_f, C) dots into one dense
    # (tb, K*dim_f)@(K*dim_f, K*C) dot with a single contiguous output slab.
    # NOTE: for very large num_classes, a per-center loop over classifier columns
    # would avoid the K-fold zero-block FLOPs; at head-sized C this is the better trade.
    bd_cls = jax.scipy.linalg.block_diag(*([classifier] * num_f_center))  # (K*dim_f, K*C)

    kernel = functools.partial(
        decoupler_head_kernel,
        dim_f=dim_f, num_f_center=num_f_center, eps=1e-12, mxu_dtype=mxu_dtype,
    )

    out_flat = pl.pallas_call(
        kernel,
        out_shape=jax.ShapeDtypeStruct((b_pad, kc), jnp.float32),
        grid=(b_pad // tb,),
        in_specs=[
            pl.BlockSpec((tb, dim_f), lambda i: (i, 0)),   # x: pipelined over batch tiles
            pl.BlockSpec((dim_f, kd), lambda i: (0, 0)),   # W: resident in VMEM across tiles
            pl.BlockSpec((kd, kc), lambda i: (0, 0)),      # block-diag classifier: resident
        ],
        out_specs=pl.BlockSpec((tb, kc), lambda i: (i, 0)),  # lane-dense contiguous store
        scratch_shapes=[pltpu.VMEM((tb, kd), jnp.float32)],
        compiler_params=pltpu.CompilerParams(
            # Batch tiles are independent -> DMA pipelining + megacore sharding on v7x.
            dimension_semantics=("parallel",),
        ),
    )(x_p, decoup_metrixs, bd_cls)

    # Free row-major reshape (no transpose), then drop batch padding.
    return out_flat[:B].reshape(B, num_f_center, num_classes)


def decoupler_head_reference(x, decoup_metrixs, classifier, *, num_f_center):
    eps = 1e-12
    dim_f = x.shape[1]
    y = x @ decoup_metrixs
    y = y.reshape(-1, num_f_center, dim_f)
    y_n = y / jnp.maximum(jnp.linalg.norm(y, axis=-1, keepdims=True), eps)
    c_n = classifier / jnp.maximum(
        jnp.linalg.norm(classifier, axis=0, keepdims=True), eps
    )
    return jnp.einsum("bkd,dc->bkc", y_n, c_n)


if __name__ == "__main__":
    dim_f = 32
    num_f_center = 4
    num_classes = 8
    B = 20  # deliberately not a tile multiple: exercises padding + a 3-step grid

    key = jax.random.PRNGKey(0)
    k_x, k_w, k_c = jax.random.split(key, 3)

    x = jax.random.normal(k_x, (B, dim_f), dtype=jnp.float32)
    decoup_metrixs = jax.random.normal(
        k_w, (dim_f, dim_f * num_f_center), dtype=jnp.float32
    )
    classifier = jax.random.normal(k_c, (dim_f, num_classes), dtype=jnp.float32)

    # block_b=8 forces grid=(3,) at this tiny demo size; real workloads use the
    # default (512 rows/tile) for DMA/compute overlap and MXU row utilization.
    out = decoupler_head(x, decoup_metrixs, classifier, block_b=8)
    out = jax.block_until_ready(out)

    ref = decoupler_head_reference(
        x, decoup_metrixs, classifier, num_f_center=num_f_center
    )
    ref = jax.block_until_ready(ref)

    assert out.shape == (B, num_f_center, num_classes), out.shape
    np.testing.assert_allclose(np.asarray(out), np.asarray(ref), rtol=2e-2, atol=2e-3)

    print("KERNEL_OK")
</pallas_src>

<mosaic_0001>
module attributes {stable_mosaic.version = 11 : i64} {
  func.func @decoupler_head_kernel(%arg0: i32, %arg1: memref<8x32xf32, #tpu.memory_space<vmem>>, %arg2: memref<32x128xf32, #tpu.memory_space<vmem>>, %arg3: memref<128x32xf32, #tpu.memory_space<vmem>>, %arg4: memref<8x32xf32, #tpu.memory_space<vmem>>, %arg5: memref<8x128xf32, #tpu.memory_space<vmem>>) attributes {dimension_semantics = [#tpu.dimension_semantics<parallel>], iteration_bounds = array<i64: 3>, scalar_prefetch = 0 : i64, scratch_operands = 1 : i64, tpu.core_type = #tpu.core_type<tc>, window_params = [{transform_indices = @transform_0, window_bounds = array<i64: 8, 32>}, {pipeline_mode = #tpu.pipeline_mode<synchronous>, transform_indices = @transform_1, window_bounds = array<i64: 32, 128>}, {pipeline_mode = #tpu.pipeline_mode<synchronous>, transform_indices = @transform_2, window_bounds = array<i64: 128, 32>}, {transform_indices = @transform_3, window_bounds = array<i64: 8, 32>}]} {
    %c0 = arith.constant 0 : index
    %c0_0 = arith.constant 0 : index
    %0 = vector.load %arg1[%c0, %c0_0] : memref<8x32xf32, #tpu.memory_space<vmem>>, vector<8x32xf32>
    %c0_1 = arith.constant 0 : index
    %c0_2 = arith.constant 0 : index
    %1 = vector.load %arg2[%c0_1, %c0_2] : memref<32x128xf32, #tpu.memory_space<vmem>>, vector<32x128xf32>
    %cst = arith.constant dense<0.000000e+00> : vector<8x128xf32>
    %2 = tpu.matmul %0, %1, %cst {dimension_numbers = #tpu.dot_dimension_numbers<[1], [0], [0], [1], [0, 0, 1, 1], [], []>} : vector<8x32xf32>, vector<32x128xf32>, vector<8x128xf32> -> vector<8x128xf32>
    %c0_3 = arith.constant 0 : index
    %c0_4 = arith.constant 0 : index
    %3 = vector.load %arg5[%c0_3, %c0_4] : memref<8x128xf32, #tpu.memory_space<vmem>>, vector<8x128xf32>
    tpu.vector_store %arg5[%c0_3, %c0_4], %2 {strides = array<i32>} : memref<8x128xf32, #tpu.memory_space<vmem>>, vector<8x128xf32>,
    %c0_5 = arith.constant 0 : index
    %c0_6 = arith.constant 0 : index
    %4 = vector.load %arg5[%c0_5, %c0_6] : memref<8x128xf32, #tpu.memory_space<vmem>>, vector<8x32xf32>
    %5 = arith.mulf %4, %4 : vector<8x32xf32>
    %cst_7 = arith.constant dense<0.000000e+00> : vector<8xf32>
    %6 = vector.multi_reduction <add>, %5, %cst_7 [1] : vector<8x32xf32> to vector<8xf32>
    %7 = vector.shape_cast %6 : vector<8xf32> to vector<8x1xf32>
    %cst_8 = arith.constant 1.000000e-24 : f32
    %8 = vector.broadcast %cst_8 : f32 to vector<8x1xf32>
    %9 = arith.maximumf %7, %8 : vector<8x1xf32>
    %10 = math.rsqrt %9 : vector<8x1xf32>
    %11 = vector.broadcast %10 : vector<8x1xf32> to vector<8x32xf32>
    %12 = arith.mulf %4, %11 : vector<8x32xf32>
    %c0_9 = arith.constant 0 : index
    %c0_10 = arith.constant 0 : index
    %13 = vector.load %arg5[%c0_9, %c0_10] : memref<8x128xf32, #tpu.memory_space<vmem>>, vector<8x32xf32>
    tpu.vector_store %arg5[%c0_9, %c0_10], %12 {strides = array<i32>} : memref<8x128xf32, #tpu.memory_space<vmem>>, vector<8x32xf32>,
    %c0_11 = arith.constant 0 : index
    %c32 = arith.constant 32 : index
    %14 = vector.load %arg5[%c0_11, %c32] : memref<8x128xf32, #tpu.memory_space<vmem>>, vector<8x32xf32>
    %15 = arith.mulf %14, %14 : vector<8x32xf32>
    %cst_12 = arith.constant dense<0.000000e+00> : vector<8xf32>
    %16 = vector.multi_reduction <add>, %15, %cst_12 [1] : vector<8x32xf32> to vector<8xf32>
    %17 = vector.shape_cast %16 : vector<8xf32> to vector<8x1xf32>
    %cst_13 = arith.constant 1.000000e-24 : f32
    %18 = vector.broadcast %cst_13 : f32 to vector<8x1xf32>
    %19 = arith.maximumf %17, %18 : vector<8x1xf32>
    %20 = math.rsqrt %19 : vector<8x1xf32>
    %21 = vector.broadcast %20 : vector<8x1xf32> to vector<8x32xf32>
    %22 = arith.mulf %14, %21 : vector<8x32xf32>
    %c0_14 = arith.constant 0 : index
    %c32_15 = arith.constant 32 : index
    %23 = vector.load %arg5[%c0_14, %c32_15] : memref<8x128xf32, #tpu.memory_space<vmem>>, vector<8x32xf32>
    tpu.vector_store %arg5[%c0_14, %c32_15], %22 {strides = array<i32>} : memref<8x128xf32, #tpu.memory_space<vmem>>, vector<8x32xf32>,
    %c0_16 = arith.constant 0 : index
    %c64 = arith.constant 64 : index
    %24 = vector.load %arg5[%c0_16, %c64] : memref<8x128xf32, #tpu.memory_space<vmem>>, vector<8x32xf32>
    %25 = arith.mulf %24, %24 : vector<8x32xf32>
    %cst_17 = arith.constant dense<0.000000e+00> : vector<8xf32>
    %26 = vector.multi_reduction <add>, %25, %cst_17 [1] : vector<8x32xf32> to vector<8xf32>
    %27 = vector.shape_cast %26 : vector<8xf32> to vector<8x1xf32>
    %cst_18 = arith.constant 1.000000e-24 : f32
    %28 = vector.broadcast %cst_18 : f32 to vector<8x1xf32>
    %29 = arith.maximumf %27, %28 : vector<8x1xf32>
    %30 = math.rsqrt %29 : vector<8x1xf32>
    %31 = vector.broadcast %30 : vector<8x1xf32> to vector<8x32xf32>
    %32 = arith.mulf %24, %31 : vector<8x32xf32>
    %c0_19 = arith.constant 0 : index
    %c64_20 = arith.constant 64 : index
    %33 = vector.load %arg5[%c0_19, %c64_20] : memref<8x128xf32, #tpu.memory_space<vmem>>, vector<8x32xf32>
    tpu.vector_store %arg5[%c0_19, %c64_20], %32 {strides = array<i32>} : memref<8x128xf32, #tpu.memory_space<vmem>>, vector<8x32xf32>,
    %c0_21 = arith.constant 0 : index
    %c96 = arith.constant 96 : index
    %34 = vector.load %arg5[%c0_21, %c96] : memref<8x128xf32, #tpu.memory_space<vmem>>, vector<8x32xf32>
    %35 = arith.mulf %34, %34 : vector<8x32xf32>
    %cst_22 = arith.constant dense<0.000000e+00> : vector<8xf32>
    %36 = vector.multi_reduction <add>, %35, %cst_22 [1] : vector<8x32xf32> to vector<8xf32>
    %37 = vector.shape_cast %36 : vector<8xf32> to vector<8x1xf32>
    %cst_23 = arith.constant 1.000000e-24 : f32
    %38 = vector.broadcast %cst_23 : f32 to vector<8x1xf32>
    %39 = arith.maximumf %37, %38 : vector<8x1xf32>
    %40 = math.rsqrt %39 : vector<8x1xf32>
    %41 = vector.broadcast %40 : vector<8x1xf32> to vector<8x32xf32>
    %42 = arith.mulf %34, %41 : vector<8x32xf32>
    %c0_24 = arith.constant 0 : index
    %c96_25 = arith.constant 96 : index
    %43 = vector.load %arg5[%c0_24, %c96_25] : memref<8x128xf32, #tpu.memory_space<vmem>>, vector<8x32xf32>
    tpu.vector_store %arg5[%c0_24, %c96_25], %42 {strides = array<i32>} : memref<8x128xf32, #tpu.memory_space<vmem>>, vector<8x32xf32>,
    %c0_26 = arith.constant 0 : index
    %c0_27 = arith.constant 0 : index
    %44 = vector.load %arg3[%c0_26, %c0_27] : memref<128x32xf32, #tpu.memory_space<vmem>>, vector<128x32xf32>
    %45 = arith.mulf %44, %44 : vector<128x32xf32>
    %cst_28 = arith.constant dense<0.000000e+00> : vector<32xf32>
    %46 = vector.multi_reduction <add>, %45, %cst_28 [0] : vector<128x32xf32> to vector<32xf32>
    %47 = vector.shape_cast %46 : vector<32xf32> to vector<1x32xf32>
    %cst_29 = arith.constant 1.000000e-24 : f32
    %48 = vector.broadcast %cst_29 : f32 to vector<1x32xf32>
    %49 = arith.maximumf %47, %48 : vector<1x32xf32>
    %50 = math.rsqrt %49 : vector<1x32xf32>
    %51 = vector.broadcast %50 : vector<1x32xf32> to vector<128x32xf32>
    %52 = arith.mulf %44, %51 : vector<128x32xf32>
    %c0_30 = arith.constant 0 : index
    %c0_31 = arith.constant 0 : index
    %53 = vector.load %arg5[%c0_30, %c0_31] : memref<8x128xf32, #tpu.memory_space<vmem>>, vector<8x128xf32>
    %cst_32 = arith.constant dense<0.000000e+00> : vector<8x32xf32>
    %54 = tpu.matmul %53, %52, %cst_32 {dimension_numbers = #tpu.dot_dimension_numbers<[1], [0], [0], [1], [0, 0, 1, 1], [], []>} : vector<8x128xf32>, vector<128x32xf32>, vector<8x32xf32> -> vector<8x32xf32>
    %c0_33 = arith.constant 0 : index
    %c0_34 = arith.constant 0 : index
    %55 = vector.load %arg4[%c0_33, %c0_34] : memref<8x32xf32, #tpu.memory_space<vmem>>, vector<8x32xf32>
    tpu.vector_store %arg4[%c0_33, %c0_34], %54 {strides = array<i32>} : memref<8x32xf32, #tpu.memory_space<vmem>>, vector<8x32xf32>,
    return
  }
  func.func @transform_0(%arg0: i32) -> (i32, i32) {
    %c0_i32 = arith.constant 0 : i32
    %c0_i32_0 = arith.constant 0 : i32
    return %arg0, %c0_i32 : i32, i32
  }
  func.func @transform_1(%arg0: i32) -> (i32, i32) {
    %c0_i32 = arith.constant 0 : i32
    %c0_i32_0 = arith.constant 0 : i32
    %c0_i32_1 = arith.constant 0 : i32
    return %c0_i32, %c0_i32_0 : i32, i32
  }
  func.func @transform_2(%arg0: i32) -> (i32, i32) {
    %c0_i32 = arith.constant 0 : i32
    %c0_i32_0 = arith.constant 0 : i32
    %c0_i32_1 = arith.constant 0 : i32
    return %c0_i32, %c0_i32_0 : i32, i32
  }
  func.func @transform_3(%arg0: i32) -> (i32, i32) {
    %c0_i32 = arith.constant 0 : i32
    %c0_i32_0 = arith.constant 0 : i32
    return %arg0, %c0_i32 : i32, i32
  }
}

</mosaic_0001>

<llo_original>
// kernel: tpu_custom_call.1
$region0: #{tpu_custom_call.1}
  #allocation0 [shape = 'u32[]', space=smem, size = 0x4, offset = 0x4, fixed_abs, tag = 'smem constant byte address 0x4 - core index']
  #allocation1 [shape = 'u32[144,128]{1,0:T(1,128)}', space=vmem, size = 0x12000, scoped, tag = 'internal scratch']
  #allocation2 [shape = 'f32[8,128]{1,0:T(8,128)}', space=vmem, size = 0x1000, scoped, tag = 'scratch operand']
  %s0 = inlined_call_operand.vmem [shape: f32[24,32], index: 0, kind: input, shape index: {}]
  %s1 = inlined_call_operand.vmem [shape: f32[32,128], index: 1, kind: input, shape index: {}]
  %s2 = inlined_call_operand.vmem [shape: f32[128,32], index: 2, kind: input, shape index: {}]
  %s3 = inlined_call_operand.hbm [shape: f32[24,32], index: 3, kind: output, shape index: {}]
  %s4 = sld [smem:[#allocation0]]
  $region45: #{tpu_custom_call.1} parent=0
    _
  %s6 = ssub.s32 1, %s4
  %s7 = scalar_select 0, %s6, %s4
  $region1: #{tpu_custom_call.1} parent=0
    #allocation3 [shape = 'u8[8192]{0}', space=vmem, size = 0x2000, scoped, tag = 'output window, operand 0']
    #allocation4 [shape = 's32[2]{0}', space=sflag, size = 0x8, scoped, tag = 'scoped memory for tpu_custom_call.1']
    %8 = vsyncpa [#allocation4], 0
    %s9 = scalar_lea.sflag [#allocation4], 1
    %10 = vsyncpa %s9, 0
    loop: start=0, step=1, limit=5
    $region2: #{tpu_custom_call.1} parent=1 // loop_pre_header
      _
    $region3: #{tpu_custom_call.1} parent=1 // loop_header
      %s12 = sphi 0, %s16
      %p13 = scmp.ge.s32.totalorder %s12, 5
      %s22 = sphi 0, %s24
      %s25 = sphi 0, %s22
      %s26 = sphi 0, %s25
      %s42 = sphi 0, %s26
      %s46 = sphi 0, %s46
      %s48 = sphi 0, %s46
      %s49 = sphi 0, %s48
      %s63 = sphi 0, %s49
      %s67 = sphi 0, %s67
      %s69 = sphi 0, %s67
      %s70 = sphi 0, %s69
      %s84 = sphi 0, %s70
      %s90 = sphi 0, %s92
      %s93 = sphi 0, %s90
      %s94 = sphi 0, %s93
      %s110 = sphi 0, %s94
    $region4: #{tpu_custom_call.1} parent=1 // loop_header_branch
      %15 = sbr.rel (%p13) target = $region8
    $region5: #{tpu_custom_call.1} parent=1 // loop_body
      %s17 = ssub.s32 %s12, 1
      %s18 = ssub.s32 %s12, 2
      %s19 = sadd.s32 %s12, 1
      %s20 = ssub.s32 %s12, %s19
      %p21 = scmp.eq.s32.totalorder %s20, 0
      %s23 = sadd.s32 %s22, 1
      %s24 = scalar_select %p21, %s22, %s23
      %p27 = pneg %p21
      %p28 = scmp.eq.s32.totalorder %s12, 2
      %p29 = por %p27, %p28
      %p30 = scmp.ne.s32.totalorder %s22, %s25
      %p31 = scmp.eq.s32.totalorder %s12, 0
      %p32 = por %p30, %p31
      %p33 = scmp.ne.s32.totalorder %s22, %s25
      %p34 = scmp.eq.s32.totalorder %s17, 2
      %p35 = por %p33, %p34
      %p36 = scmp.ne.s32.totalorder %s25, %s26
      %p37 = scmp.eq.s32.totalorder %s17, 0
      %p38 = por %p36, %p37
      %p39 = scmp.ne.s32.totalorder %s25, %s26
      %p40 = scmp.eq.s32.totalorder %s18, 2
      %p41 = por %p39, %p40
      %p43 = scmp.ne.s32.totalorder %s26, %s42
      %p44 = scmp.eq.s32.totalorder %s18, 0
      %p45 = por %p43, %p44
      %s47 = sadd.s32 %s46, 1
      %p50 = scmp.eq.s32.totalorder %s12, 2
      %p51 = scmp.ne.s32.totalorder %s46, %s48
      %p52 = scmp.eq.s32.totalorder %s12, 0
      %p53 = por %p51, %p52
      %p54 = scmp.ne.s32.totalorder %s46, %s48
      %p55 = scmp.eq.s32.totalorder %s17, 2
      %p56 = por %p54, %p55
      %p57 = scmp.ne.s32.totalorder %s48, %s49
      %p58 = scmp.eq.s32.totalorder %s17, 0
      %p59 = por %p57, %p58
      %p60 = scmp.ne.s32.totalorder %s48, %s49
      %p61 = scmp.eq.s32.totalorder %s18, 2
      %p62 = por %p60, %p61
      %p64 = scmp.ne.s32.totalorder %s49, %s63
      %p65 = scmp.eq.s32.totalorder %s18, 0
      %p66 = por %p64, %p65
      %s68 = sadd.s32 %s67, 1
      %p71 = scmp.eq.s32.totalorder %s12, 2
      %p72 = scmp.ne.s32.totalorder %s67, %s69
      %p73 = scmp.eq.s32.totalorder %s12, 0
      %p74 = por %p72, %p73
      %p75 = scmp.ne.s32.totalorder %s67, %s69
      %p76 = scmp.eq.s32.totalorder %s17, 2
      %p77 = por %p75, %p76
      %p78 = scmp.ne.s32.totalorder %s69, %s70
      %p79 = scmp.eq.s32.totalorder %s17, 0
      %p80 = por %p78, %p79
      %p81 = scmp.ne.s32.totalorder %s69, %s70
      %p82 = scmp.eq.s32.totalorder %s18, 2
      %p83 = por %p81, %p82
      %p85 = scmp.ne.s32.totalorder %s70, %s84
      %p86 = scmp.eq.s32.totalorder %s18, 0
      %p87 = por %p85, %p86
      %s88 = ssub.s32 %s12, %s19
      %p89 = scmp.eq.s32.totalorder %s88, 0
      %s91 = sadd.s32 %s90, 1
      %s92 = scalar_select %p89, %s90, %s91
      %p95 = pneg %p89
      %p96 = scmp.eq.s32.totalorder %s12, 2
      %p97 = por %p95, %p96
      %p98 = scmp.ne.s32.totalorder %s90, %s93
      %p99 = scmp.eq.s32.totalorder %s12, 0
      %p100 = por %p98, %p99
      %p101 = scmp.ne.s32.totalorder %s90, %s93
      %p102 = scmp.eq.s32.totalorder %s17, 2
      %p103 = por %p101, %p102
      %p104 = scmp.ne.s32.totalorder %s93, %s94
      %p105 = scmp.eq.s32.totalorder %s17, 0
      %p106 = por %p104, %p105
      %p107 = scmp.ne.s32.totalorder %s93, %s94
      %p108 = scmp.eq.s32.totalorder %s18, 2
      %p109 = por %p107, %p108
      %p111 = scmp.ne.s32.totalorder %s94, %s110
      %p112 = scmp.eq.s32.totalorder %s18, 0
      %p113 = por %p111, %p112
      %p114 = scmp.le.s32.totalorder 1, %s12
      %p115 = scmp.lt.s32.totalorder %s12, 4
      %p116 = pnand %p114, %p115
      %p117 = pneg %p116
      // Predicated region
      $region9: #{tpu_custom_call.1} parent=5 // pred_check
        _
      $region10: #{tpu_custom_call.1} parent=5 // pred_check_branch
        %119 = sbr.rel (%p116) target = $region12
      $region11: #{tpu_custom_call.1} parent=5 // pred_region
        %s120 = ssub.s32 %s12, 1
        // Predicated region
        $region13: #{tpu_custom_call.1} parent=11 // pred_check
          %p121 = pneg %p59
        $region14: #{tpu_custom_call.1} parent=11 // pred_check_branch
          %123 = sbr.rel (%p121) target = $region16
        $region15: #{tpu_custom_call.1} parent=11 // pred_region
          _
        $region16: #{tpu_custom_call.1} parent=11 // pred_fallthru
          _
        // Predicated region
        $region17: #{tpu_custom_call.1} parent=11 // pred_check
          %p124 = pneg %p80
        $region18: #{tpu_custom_call.1} parent=11 // pred_check_branch
          %126 = sbr.rel (%p124) target = $region20
        $region19: #{tpu_custom_call.1} parent=11 // pred_region
          _
        $region20: #{tpu_custom_call.1} parent=11 // pred_fallthru
          _
      $region12: #{tpu_custom_call.1} parent=5 // pred_fallthru
        _
      %p127 = scmp.lt.s32.totalorder %s12, 3
      // Predicated region
      $region21: #{tpu_custom_call.1} parent=5 // pred_check
        %p128 = pneg %p127
      $region22: #{tpu_custom_call.1} parent=5 // pred_check_branch
        %130 = sbr.rel (%p128) target = $region24
      $region23: #{tpu_custom_call.1} parent=5 // pred_region
        // Predicated region
        $region25: #{tpu_custom_call.1} parent=23 // pred_check
          %p131 = pneg %p32
        $region26: #{tpu_custom_call.1} parent=23 // pred_check_branch
          %133 = sbr.rel (%p131) target = $region28
        $region27: #{tpu_custom_call.1} parent=23 // pred_region
          %p134 = scmp.lt.s32.totalorder %s12, 2
          %s135 = scalar_select %p134, %s12, 2
          %s136 = smul.addr %s135, 8
          %s137 = scalar_lea.vmem %s0, %s136
        $region28: #{tpu_custom_call.1} parent=23 // pred_fallthru
          _
      $region24: #{tpu_custom_call.1} parent=5 // pred_fallthru
        _
      %p138 = scmp.le.s32.totalorder 1, %s12
      %p139 = scmp.lt.s32.totalorder %s12, 4
      %p140 = pnand %p138, %p139
      %p141 = pneg %p140
      // Predicated region
      $region29: #{tpu_custom_call.1} parent=5 // pred_check
        _
      $region30: #{tpu_custom_call.1} parent=5 // pred_check_branch
        %143 = sbr.rel (%p140) target = $region32
      $region31: #{tpu_custom_call.1} parent=5 // pred_region
        %s144 = ssub.s32 %s12, 1
        %p145 = scmp.lt.s32.totalorder %s17, 2
        %s146 = scalar_select %p145, %s17, 2
        %s147 = smul.addr %s146, 8
        %s148 = scalar_lea.vmem %s0, %s147
        %p149 = pneg %p38
        %p150 = pneg %p35
        %p151 = pneg %p59
        %p152 = pneg %p56
        %p153 = pneg %p80
        %p154 = pneg %p77
        %p155 = pneg %p106
        %p156 = pneg %p103
        %s157 = sand.u32 %s93, 1
        %s158 = scalar_lea.sflag [#allocation4], %s157
        %s159 = sand.u32 %s93, 1
        %s160 = smul.addr %s159, 8
        %s161 = scalar_lea.vmem [#allocation3], %s160
        %p162 = scmp.lt.s32.totalorder %s17, 2
        %s163 = scalar_select %p162, %s17, 2
        %s164 = smul.addr %s163, 8
        %s165 = scalar_lea.vmem %s0, %s164
        %v166 = vld [vmem:[%s165] sm:$0xff]
        %v167 = vld [vmem:[%s1] sm:$0xff]
        %v168 = vld [vmem:[%s1 + $0x8] sm:$0xff]
        %v169 = vld [vmem:[%s1 + $0x10] sm:$0xff]
        %v170 = vld [vmem:[%s1 + $0x18] sm:$0xff]
        %vm171 = vcmask 261120
        %v173 = vsel %vm171, %v166, 0
        %175 = vmatprep.subr.mxu0 0.0
        %176 = vmatpush1.msra.mxu0 0.0
        %177 = vmatprep.subr.mxu0 0.0
        %178 = vmatpush1.msra.mxu0 0.0
        %179 = vmatprep.subr.mxu0 0.0
        %180 = vmatpush1.msra.mxu0 0.0
        %181 = vmatprep.subr.mxu0 0.0
        %182 = vmatpush1.msra.mxu0 0.0
        %183 = vmatprep.subr.mxu0 0.0
        %184 = vmatpush1.msra.mxu0 0.0
        %185 = vmatprep.subr.mxu0 0.0
        %186 = vmatpush1.msra.mxu0 0.0
        %187 = vmatprep.subr.mxu0 0.0
        %188 = vmatpush1.msra.mxu0 0.0
        %189 = vmatprep.subr.mxu0 0.0
        %190 = vmatpush1.msra.mxu0 0.0
        %191 = vmatprep.subr.mxu0 0.0
        %192 = vmatpush1.msra.mxu0 0.0
        %193 = vmatprep.subr.mxu0 0.0
        %194 = vmatpush1.msra.mxu0 0.0
        %195 = vmatprep.subr.mxu0 0.0
        %196 = vmatpush1.msra.mxu0 0.0
        %197 = vmatprep.subr.mxu0 0.0
        %198 = vmatpush1.msra.mxu0 0.0
        %199 = vmatprep.subr.mxu0 0.0
        %200 = vmatpush1.msra.mxu0 %v170
        %201 = vmatprep.subr.mxu0 0.0
        %202 = vmatpush1.msra.mxu0 %v169
        %203 = vmatprep.subr.mxu0 0.0
        %204 = vmatpush1.msra.mxu0 %v168
        %205 = vmatprep.subr.mxu0 0.0
        %206 = vmatpush1.msra.mxu0 %v167
        %207 = vmatprep.subr.mxu0 0.0
        %208 = vmatpush2.msra.mxu0 0.0
        %209 = vmatprep.subr.mxu0 0.0
        %210 = vmatpush2.msra.mxu0 0.0
        %211 = vmatprep.subr.mxu0 0.0
        %212 = vmatpush2.msra.mxu0 0.0
        %213 = vmatprep.subr.mxu0 0.0
        %214 = vmatpush2.msra.mxu0 0.0
        %215 = vmatprep.subr.mxu0 0.0
        %216 = vmatpush2.msra.mxu0 0.0
        %217 = vmatprep.subr.mxu0 0.0
        %218 = vmatpush2.msra.mxu0 0.0
        %219 = vmatprep.subr.mxu0 0.0
        %220 = vmatpush2.msra.mxu0 0.0
        %221 = vmatprep.subr.mxu0 0.0
        %222 = vmatpush2.msra.mxu0 0.0
        %223 = vmatprep.subr.mxu0 0.0
        %224 = vmatpush2.msra.mxu0 0.0
        %225 = vmatprep.subr.mxu0 0.0
        %226 = vmatpush2.msra.mxu0 0.0
        %227 = vmatprep.subr.mxu0 0.0
        %228 = vmatpush2.msra.mxu0 0.0
        %229 = vmatprep.subr.mxu0 0.0
        %230 = vmatpush2.msra.mxu0 0.0
        %231 = vmatprep.subr.mxu0 0.0
        %232 = vmatpush2.msra.mxu0 0.0
        %233 = vmatprep.subr.mxu0 0.0
        %234 = vmatpush2.msra.mxu0 0.0
        %235 = vmatprep.subr.mxu0 0.0
        %236 = vmatpush2.msra.mxu0 0.0
        %237 = vmatprep.subr.mxu0 0.0
        %238 = vmatpush2.msra.mxu0 0.0
        %239 = vmatprep.mubr.f32.mxu0 0.0
        %240 = vmatmul.mubr.f32.gmra.mxu0 %v173
        %v241 = vpop.f32.mrf.mxu0
        %v242 = vadd.f32 0.0, %v241
        %v243 = vpop.f32.mrf.mxu0
        %244 = vdwg.mxu0
        %245 = vst [vmem:[#allocation2] sm:$0xff] %v242
        %v246 = vld [vmem:[#allocation2] sm:$0xff]
        %v247 = vmul.f32 %v246, %v246
        %v248 = vsel %vm171, %v247, 0.0
        %249 = vadd.xlane.f32.xlu0 %v248
        %v250 = vpop.xlane.xlu0 %249
        %v251 = vmax.f32 %v250, 1e-24
        %v252 = vrsqrt.pop %v251
        %v253 = vmul.f32 %v246, %v252
        %254 = vst.msk [vmem:[#allocation2] sm:$0xff] %vm171, %v253
        %v255 = vld [vmem:[#allocation2] sm:$0xff]
        %v256 = vmul.f32 %v255, %v255
        %258 = vrot.lane.b32.xlu0 %v256, 96
        %v259 = vpop.permute.xlu0 %258
        %v261 = vsel %vm171, %v259, 0.0
        %262 = vadd.xlane.f32.xlu0 %v261
        %v263 = vpop.xlane.xlu0 %262
        %v264 = vmax.f32 %v263, 1e-24
        %v265 = vrsqrt.pop %v264
        %v266 = vmul.f32 %v255, %v265
        %vm267 = vcmask 523520
        %268 = vst.msk [vmem:[#allocation2] sm:$0xff] %vm267, %v266
        %v269 = vld [vmem:[#allocation2] sm:$0xff]
        %v270 = vmul.f32 %v269, %v269
        %272 = vrot.lane.b32.xlu0 %v270, 64
        %v273 = vpop.permute.xlu0 %272
        %v275 = vsel %vm171, %v273, 0.0
        %276 = vadd.xlane.f32.xlu0 %v275
        %v277 = vpop.xlane.xlu0 %276
        %v278 = vmax.f32 %v277, 1e-24
        %v279 = vrsqrt.pop %v278
        %v280 = vmul.f32 %v269, %v279
        %vm281 = vcmask 785920
        %282 = vst.msk [vmem:[#allocation2] sm:$0xff] %vm281, %v280
        %v283 = vld [vmem:[#allocation2] sm:$0xff]
        %v284 = vmul.f32 %v283, %v283
        %286 = vrot.lane.b32.xlu0 %v284, 32
        %v287 = vpop.permute.xlu0 %286
        %v289 = vsel %vm171, %v287, 0.0
        %290 = vadd.xlane.f32.xlu0 %v289
        %v291 = vpop.xlane.xlu0 %290
        %v292 = vmax.f32 %v291, 1e-24
        %v293 = vrsqrt.pop %v292
        %v294 = vmul.f32 %v283, %v293
        %vm295 = vcmask 1048320
        %296 = vst.msk [vmem:[#allocation2] sm:$0xff] %vm295, %v294
        %v297 = vld [vmem:[%s2] sm:$0xff]
        %v298 = vld [vmem:[%s2 + $0x8] sm:$0xff]
        %v299 = vld [vmem:[%s2 + $0x10] sm:$0xff]
        %v300 = vld [vmem:[%s2 + $0x18] sm:$0xff]
        %v301 = vld [vmem:[%s2 + $0x20] sm:$0xff]
        %v302 = vld [vmem:[%s2 + $0x28] sm:$0xff]
        %v303 = vld [vmem:[%s2 + $0x30] sm:$0xff]
        %v304 = vld [vmem:[%s2 + $0x38] sm:$0xff]
        %v305 = vld [vmem:[%s2 + $0x40] sm:$0xff]
        %v306 = vld [vmem:[%s2 + $0x48] sm:$0xff]
        %v307 = vld [vmem:[%s2 + $0x50] sm:$0xff]
        %v308 = vld [vmem:[%s2 + $0x58] sm:$0xff]
        %v309 = vld [vmem:[%s2 + $0x60] sm:$0xff]
        %v310 = vld [vmem:[%s2 + $0x68] sm:$0xff]
        %v311 = vld [vmem:[%s2 + $0x70] sm:$0xff]
        %v312 = vld [vmem:[%s2 + $0x78] sm:$0xff]
        %v313 = vmul.f32 %v297, %v297
        %v314 = vmul.f32 %v298, %v298
        %v315 = vmul.f32 %v299, %v299
        %v316 = vmul.f32 %v300, %v300
        %v317 = vmul.f32 %v301, %v301
        %v318 = vmul.f32 %v302, %v302
        %v319 = vmul.f32 %v303, %v303
        %v320 = vmul.f32 %v304, %v304
        %v321 = vmul.f32 %v305, %v305
        %v322 = vmul.f32 %v306, %v306
        %v323 = vmul.f32 %v307, %v307
        %v324 = vmul.f32 %v308, %v308
        %v325 = vmul.f32 %v309, %v309
        %v326 = vmul.f32 %v310, %v310
        %v327 = vmul.f32 %v311, %v311
        %v328 = vmul.f32 %v312, %v312
        %v329 = vsel %vm171, %v313, 0.0
        %v330 = vsel %vm171, %v314, 0.0
        %v331 = vadd.f32 %v329, %v330
        %v332 = vsel %vm171, %v315, 0.0
        %v333 = vadd.f32 %v331, %v332
        %v334 = vsel %vm171, %v316, 0.0
        %v335 = vadd.f32 %v333, %v334
        %v336 = vsel %vm171, %v317, 0.0
        %v337 = vadd.f32 %v335, %v336
        %v338 = vsel %vm171, %v318, 0.0
        %v339 = vadd.f32 %v337, %v338
        %v340 = vsel %vm171, %v319, 0.0
        %v341 = vadd.f32 %v339, %v340
        %v342 = vsel %vm171, %v320, 0.0
        %v343 = vadd.f32 %v341, %v342
        %v344 = vsel %vm171, %v321, 0.0
        %v345 = vadd.f32 %v343, %v344
        %v346 = vsel %vm171, %v322, 0.0
        %v347 = vadd.f32 %v345, %v346
        %v348 = vsel %vm171, %v323, 0.0
        %v349 = vadd.f32 %v347, %v348
        %v350 = vsel %vm171, %v324, 0.0
        %v351 = vadd.f32 %v349, %v350
        %v352 = vsel %vm171, %v325, 0.0
        %v353 = vadd.f32 %v351, %v352
        %v354 = vsel %vm171, %v326, 0.0
        %v355 = vadd.f32 %v353, %v354
        %v356 = vsel %vm171, %v327, 0.0
        %v357 = vadd.f32 %v355, %v356
        %v358 = vsel %vm171, %v328, 0.0
        %v359 = vadd.f32 %v357, %v358
        %v360 = vrot.slane %v359, 4
        %v361 = vadd.f32 %v359, %v360
        %v362 = vrot.slane %v361, 2
        %v363 = vadd.f32 %v361, %v362
        %v364 = vrot.slane %v363, 1
        %v365 = vadd.f32 %v363, %v364
        %v366 = vmax.f32 %v365, 1e-24
        %v367 = vrsqrt.pop %v366
        %v368 = vmul.f32 %v297, %v367
        %v369 = vmul.f32 %v298, %v367
        %v370 = vmul.f32 %v299, %v367
        %v371 = vmul.f32 %v300, %v367
        %v372 = vmul.f32 %v301, %v367
        %v373 = vmul.f32 %v302, %v367
        %v374 = vmul.f32 %v303, %v367
        %v375 = vmul.f32 %v304, %v367
        %v376 = vmul.f32 %v305, %v367
        %v377 = vmul.f32 %v306, %v367
        %v378 = vmul.f32 %v307, %v367
        %v379 = vmul.f32 %v308, %v367
        %v380 = vmul.f32 %v309, %v367
        %v381 = vmul.f32 %v310, %v367
        %v382 = vmul.f32 %v311, %v367
        %v383 = vmul.f32 %v312, %v367
        %v384 = vld [vmem:[#allocation2] sm:$0xff]
        %385 = vmatprep.subr.mxu0 0.0
        %386 = vmatpush1.msra.mxu0 %v383
        %387 = vmatprep.subr.mxu0 0.0
        %388 = vmatpush1.msra.mxu0 %v382
        %389 = vmatprep.subr.mxu0 0.0
        %390 = vmatpush1.msra.mxu0 %v381
        %391 = vmatprep.subr.mxu0 0.0
        %392 = vmatpush1.msra.mxu0 %v380
        %393 = vmatprep.subr.mxu0 0.0
        %394 = vmatpush1.msra.mxu0 %v379
        %395 = vmatprep.subr.mxu0 0.0
        %396 = vmatpush1.msra.mxu0 %v378
        %397 = vmatprep.subr.mxu0 0.0
        %398 = vmatpush1.msra.mxu0 %v377
        %399 = vmatprep.subr.mxu0 0.0
        %400 = vmatpush1.msra.mxu0 %v376
        %401 = vmatprep.subr.mxu0 0.0
        %402 = vmatpush1.msra.mxu0 %v375
        %403 = vmatprep.subr.mxu0 0.0
        %404 = vmatpush1.msra.mxu0 %v374
        %405 = vmatprep.subr.mxu0 0.0
        %406 = vmatpush1.msra.mxu0 %v373
        %407 = vmatprep.subr.mxu0 0.0
        %408 = vmatpush1.msra.mxu0 %v372
        %409 = vmatprep.subr.mxu0 0.0
        %410 = vmatpush1.msra.mxu0 %v371
        %411 = vmatprep.subr.mxu0 0.0
        %412 = vmatpush1.msra.mxu0 %v370
        %413 = vmatprep.subr.mxu0 0.0
        %414 = vmatpush1.msra.mxu0 %v369
        %415 = vmatprep.subr.mxu0 0.0
        %416 = vmatpush1.msra.mxu0 %v368
        %417 = vmatprep.subr.mxu0 0.0
        %418 = vmatpush2.msra.mxu0 0.0
        %419 = vmatprep.subr.mxu0 0.0
        %420 = vmatpush2.msra.mxu0 0.0
        %421 = vmatprep.subr.mxu0 0.0
        %422 = vmatpush2.msra.mxu0 0.0
        %423 = vmatprep.subr.mxu0 0.0
        %424 = vmatpush2.msra.mxu0 0.0
        %425 = vmatprep.subr.mxu0 0.0
        %426 = vmatpush2.msra.mxu0 0.0
        %427 = vmatprep.subr.mxu0 0.0
        %428 = vmatpush2.msra.mxu0 0.0
        %429 = vmatprep.subr.mxu0 0.0
        %430 = vmatpush2.msra.mxu0 0.0
        %431 = vmatprep.subr.mxu0 0.0
        %432 = vmatpush2.msra.mxu0 0.0
        %433 = vmatprep.subr.mxu0 0.0
        %434 = vmatpush2.msra.mxu0 0.0
        %435 = vmatprep.subr.mxu0 0.0
        %436 = vmatpush2.msra.mxu0 0.0
        %437 = vmatprep.subr.mxu0 0.0
        %438 = vmatpush2.msra.mxu0 0.0
        %439 = vmatprep.subr.mxu0 0.0
        %440 = vmatpush2.msra.mxu0 0.0
        %441 = vmatprep.subr.mxu0 0.0
        %442 = vmatpush2.msra.mxu0 0.0
        %443 = vmatprep.subr.mxu0 0.0
        %444 = vmatpush2.msra.mxu0 0.0
        %445 = vmatprep.subr.mxu0 0.0
        %446 = vmatpush2.msra.mxu0 0.0
        %447 = vmatprep.subr.mxu0 0.0
        %448 = vmatpush2.msra.mxu0 0.0
        %449 = vmatprep.mubr.f32.mxu0 0.0
        %450 = vmatmul.mubr.f32.gmra.mxu0 %v384
        %v451 = vpop.f32.mrf.mxu0
        %v452 = vadd.f32 0.0, %v451
        %v453 = vpop.f32.mrf.mxu0
        %454 = vdwg.mxu0
        %455 = vst.msk [vmem:[%s161] sm:$0xff] %vm171, %v452
        %s456 = sand.u32 %s93, 1
        %s457 = scalar_lea.sflag [#allocation4], %s456
        %s458 = sand.u32 %s93, 1
        %s459 = smul.addr %s458, 8
        %s460 = scalar_lea.vmem [#allocation3], %s459
        // Predicated region
        $region33: #{tpu_custom_call.1} parent=31 // pred_check
          %p461 = pneg %p103
        $region34: #{tpu_custom_call.1} parent=31 // pred_check_branch
          %463 = sbr.rel (%p461) target = $region36
        $region35: #{tpu_custom_call.1} parent=31 // pred_region
          %s465 = ssub.s32 128, 128
          %466 = vsyncadd %s457, %s465
          %s467 = smul.addr %s17, 128
          %s468 = scalar_lea.hbm %s3, %s467
          %s470 = sshll.u32 %s460, 4
          %s471 = int_to_ptr.vmem [resolvable:$true] %s470
          %473 = dma.vmem_to_hbm [thread:$0]  %s471, 128, %s468, %s457
        $region36: #{tpu_custom_call.1} parent=31 // pred_fallthru
          _
      $region32: #{tpu_custom_call.1} parent=5 // pred_fallthru
        _
      %p474 = scmp.le.s32.totalorder 2, %s12
      // Predicated region
      $region37: #{tpu_custom_call.1} parent=5 // pred_check
        %p475 = pneg %p474
      $region38: #{tpu_custom_call.1} parent=5 // pred_check_branch
        %477 = sbr.rel (%p475) target = $region40
      $region39: #{tpu_custom_call.1} parent=5 // pred_region
        %s478 = ssub.s32 %s12, 2
        // Predicated region
        $region41: #{tpu_custom_call.1} parent=39 // pred_check
          %p479 = pneg %p109
        $region42: #{tpu_custom_call.1} parent=39 // pred_check_branch
          %481 = sbr.rel (%p479) target = $region44
        $region43: #{tpu_custom_call.1} parent=39 // pred_region
          %s482 = sand.u32 %s94, 1
          %s483 = scalar_lea.sflag [#allocation4], %s482
          %s484 = sand.u32 %s94, 1
          %s485 = smul.addr %s484, 8
          %s486 = scalar_lea.vmem [#allocation3], %s485
          %487 = dma.done %s483, 128
        $region44: #{tpu_custom_call.1} parent=39 // pred_fallthru
          _
      $region40: #{tpu_custom_call.1} parent=5 // pred_fallthru
        _
    $region6: #{tpu_custom_call.1} parent=1 // loop_footer
      %s16 = sadd.s32 1, %s12
    $region7: #{tpu_custom_call.1} parent=1 // loop_footer_branch
      %11 = sbr.rel target = $region3
    $region8: #{tpu_custom_call.1} parent=1 // loop_exit
      _
    %488 = vsyncpa [#allocation4], 1
    %s489 = scalar_lea.sflag [#allocation4], 1
    %490 = vsyncpa %s489, 1

</llo_original>
